<compile_context>
chip_gen: v6e
topology: v6e:2x2x1
jax: 0.10.0
libtpu: 0.0.40
codegen_flags: <defaults>
</compile_context>

<pallas_src>
import jax
import jax.numpy as jnp
import numpy as np
from jax.experimental import pallas as pl
from jax.experimental.pallas import tpu as pltpu


def _round_up(a: int, b: int) -> int:
    return ((a + b - 1) // b) * b


def _sublane_quantum(dtype) -> int:
    # 8 sublanes of 32-bit; sub-32-bit dtypes pack along sublanes (bf16 -> 16).
    return max(8, 32 // jnp.dtype(dtype).itemsize)


def _make_gate_kernel(act):
    def kernel(x_ref, h_ref, w_ref, u_ref, b_ref, o_ref):
        mxu_dt = w_ref.dtype
        # Two MXU contractions with f32 accumulation; activations are cast to the
        # weight dtype (bf16) on the fly, in VMEM, so the MXU runs the fast path
        # without an extra wrapper-side HBM pass for the cast.
        z = jnp.dot(x_ref[...].astype(mxu_dt), w_ref[...],
                    preferred_element_type=jnp.float32)
        z = z + jnp.dot(h_ref[...].astype(mxu_dt), u_ref[...],
                        preferred_element_type=jnp.float32)
        # f32 VPU bias add + EUP activation, written straight to the output block.
        z = z + b_ref[...].astype(jnp.float32)
        o_ref[...] = act(z).astype(o_ref.dtype)
    return kernel


def _param_spec(shape, index_map, single_buffer):
    """BlockSpec for a parameter block; single-buffered when grid-invariant
    (halves the weight VMEM footprint -- matters on v7x's 64 MiB VMEM)."""
    if single_buffer:
        try:
            return pl.BlockSpec(shape, index_map, pipeline_mode=pl.Buffered(1))
        except (TypeError, AttributeError):
            pass  # older jax without pipeline_mode / Buffered
    return pl.BlockSpec(shape, index_map)


def prepare_gate_params(W, U, bias, *, mxu_dtype=jnp.bfloat16, block_cols=512):
    """One-time (init-time) parameter layout.

    Pads the gate width to a lane-dense multiple of the column tile and casts
    the MXU operands to bf16.  In a real model this runs once in __init__; the
    per-step path below never touches the f32 weights again.
    """
    input_dim, output_dim = W.shape
    assert U.shape == (output_dim, output_dim)
    assert bias.shape == (1, output_dim)

    # Column tile: multiple of 128 lanes (unmasked vst), >=512 preferred for wide
    # gates, capped at the 128-rounded gate width for small gates.
    tn = min(block_cols, _round_up(output_dim, 128))
    h_pad = _round_up(output_dim, tn)

    W_p = jnp.zeros((input_dim, h_pad), mxu_dtype).at[:, :output_dim].set(
        W.astype(mxu_dtype))
    U_p = jnp.zeros((output_dim, h_pad), mxu_dtype).at[:, :output_dim].set(
        U.astype(mxu_dtype))
    # Bias stays f32: it is added in the f32 epilogue.
    b_p = jnp.zeros((1, h_pad), jnp.float32).at[:, :output_dim].set(
        bias.astype(jnp.float32))

    meta = dict(input_dim=input_dim, output_dim=output_dim, tn=tn, h_pad=h_pad)
    return (W_p, U_p, b_p), meta


def gate_mirrored(params, meta, x, h, *, act=jax.nn.sigmoid, block_rows=512):
    """act(x @ W + h @ U + bias) with pre-laid-out params (see prepare_gate_params)."""
    W_p, U_p, b_p = params
    input_dim, output_dim = meta["input_dim"], meta["output_dim"]
    tn, h_pad = meta["tn"], meta["h_pad"]

    N = x.shape[0]
    assert x.shape == (N, input_dim)
    assert h.shape == (N, output_dim)

    # Row tile: sublane-aligned only; no padding of N to a full tile.  Pallas
    # handles the partial trailing block and drops out-of-bounds stores.
    q = max(_sublane_quantum(x.dtype), _sublane_quantum(h.dtype))
    tm = min(block_rows, _round_up(N, q))
    n_row = pl.cdiv(N, tm)
    n_col = h_pad // tn
    grid = (n_row, n_col)

    single_buffer = n_col == 1  # weight/bias blocks grid-invariant

    out_dtype = x.dtype
    itm_x = jnp.dtype(x.dtype).itemsize
    itm_h = jnp.dtype(h.dtype).itemsize
    itm_w = jnp.dtype(W_p.dtype).itemsize
    itm_o = jnp.dtype(out_dtype).itemsize

    # Explicit scoped-VMEM budget: pipelined tiles + headroom, capped below v7x's
    # 64 MiB physical VMEM (v5e/v6e have 128 MiB, so the cap is safe everywhere).
    nbuf_w = 1 if single_buffer else 2
    tile_bytes = (2 * tm * input_dim * itm_x
                  + 2 * tm * output_dim * itm_h
                  + nbuf_w * input_dim * tn * itm_w
                  + nbuf_w * output_dim * tn * itm_w
                  + nbuf_w * tn * 4
                  + 2 * tm * tn * itm_o)
    vmem_limit = int(min(max(2 * tile_bytes + (4 << 20), 32 << 20), 56 << 20))

    cost = pl.CostEstimate(
        flops=2 * N * (input_dim + output_dim) * h_pad,
        transcendentals=N * h_pad,
        bytes_accessed=(N * input_dim * itm_x + N * output_dim * itm_h
                        + n_row * (W_p.size + U_p.size) * itm_w
                        + n_row * b_p.size * 4
                        + N * h_pad * itm_o),
    )

    kernel = _make_gate_kernel(act)

    def _call(use_single_buffer):
        in_specs = [
            pl.BlockSpec((tm, input_dim), lambda i, j: (i, 0)),    # x row tile
            pl.BlockSpec((tm, output_dim), lambda i, j: (i, 0)),   # h row tile
            _param_spec((input_dim, tn), lambda i, j: (0, j), use_single_buffer),
            _param_spec((output_dim, tn), lambda i, j: (0, j), use_single_buffer),
            _param_spec((1, tn), lambda i, j: (0, j), use_single_buffer),
        ]
        return pl.pallas_call(
            kernel,
            out_shape=jax.ShapeDtypeStruct((N, h_pad), out_dtype),
            grid=grid,
            in_specs=in_specs,
            out_specs=pl.BlockSpec((tm, tn), lambda i, j: (i, j)),
            compiler_params=pltpu.CompilerParams(
                dimension_semantics=("parallel", "parallel"),
                vmem_limit_bytes=vmem_limit),
            cost_estimate=cost,
        )(x, h, W_p, U_p, b_p)

    if single_buffer:
        try:
            out = _call(True)
        except Exception:
            # pl.Buffered(1) not supported by this jax/Mosaic version: fall back
            # to default double-buffered parameter blocks.
            out = _call(False)
    else:
        out = _call(False)

    # Strip the lane padding back to the logical gate width (zero-cost if exact).
    return out[:, :output_dim] if h_pad != output_dim else out


def init_glorot(key, shape, dtype=jnp.float32):
    """Deterministic glorot-uniform init matching init_glorot([fan_in, fan_out])."""
    fan_in, fan_out = shape
    limit = np.sqrt(6.0 / (fan_in + fan_out))
    return jax.random.uniform(key, shape, dtype=dtype, minval=-limit, maxval=limit)


if __name__ == "__main__":
    # Small shapes consistent with the module: seq/batch N=8, hidden=32.
    N, input_dim, output_dim = 8, 32, 32

    key = jax.random.PRNGKey(0)
    kx, kh, kw, ku, kb = jax.random.split(key, 5)

    x = jax.random.normal(kx, (N, input_dim), dtype=jnp.float32)
    h = jax.random.normal(kh, (N, output_dim), dtype=jnp.float32)
    W = init_glorot(kw, (input_dim, output_dim))
    U = init_glorot(ku, (output_dim, output_dim))
    bias = init_glorot(kb, (1, output_dim))

    # One-time parameter layout (would live in the module's __init__).
    params, meta = prepare_gate_params(W, U, bias)

    out = gate_mirrored(params, meta, x, h, act=jax.nn.sigmoid)
    out = jax.block_until_ready(out)

    ref = jax.nn.sigmoid(x @ W + h @ U + bias)
    # bf16 MXU operands with f32 accumulation: compare at bf16-level tolerance.
    np.testing.assert_allclose(np.asarray(out), np.asarray(ref),
                               rtol=2e-2, atol=2e-2)
    print("KERNEL_OK")
</pallas_src>

<mosaic_0001>
module attributes {stable_mosaic.version = 11 : i64} {
  func.func @kernel(%arg0: i32, %arg1: i32, %arg2: memref<8x32xf32, #tpu.memory_space<vmem>>, %arg3: memref<8x32xf32, #tpu.memory_space<vmem>>, %arg4: memref<32x128xbf16, #tpu.memory_space<vmem>>, %arg5: memref<32x128xbf16, #tpu.memory_space<vmem>>, %arg6: memref<1x128xf32, #tpu.memory_space<vmem>>, %arg7: memref<8x128xf32, #tpu.memory_space<vmem>>) attributes {dimension_semantics = [#tpu.dimension_semantics<parallel>, #tpu.dimension_semantics<parallel>], iteration_bounds = array<i64: 1, 1>, scalar_prefetch = 0 : i64, scratch_operands = 0 : i64, tpu.core_type = #tpu.core_type<tc>, window_params = [{transform_indices = @transform_0, window_bounds = array<i64: 8, 32>}, {transform_indices = @transform_1, window_bounds = array<i64: 8, 32>}, {pipeline_mode = #tpu.pipeline_mode<synchronous>, transform_indices = @transform_2, window_bounds = array<i64: 32, 128>}, {pipeline_mode = #tpu.pipeline_mode<synchronous>, transform_indices = @transform_3, window_bounds = array<i64: 32, 128>}, {pipeline_mode = #tpu.pipeline_mode<synchronous>, transform_indices = @transform_4, window_bounds = array<i64: 1, 128>}, {transform_indices = @transform_5, window_bounds = array<i64: 8, 128>}]} {
    %c0 = arith.constant 0 : index
    %c0_0 = arith.constant 0 : index
    %0 = vector.load %arg2[%c0, %c0_0] : memref<8x32xf32, #tpu.memory_space<vmem>>, vector<8x32xf32>
    %1 = arith.truncf %0 : vector<8x32xf32> to vector<8x32xbf16>
    %c0_1 = arith.constant 0 : index
    %c0_2 = arith.constant 0 : index
    %2 = vector.load %arg4[%c0_1, %c0_2] : memref<32x128xbf16, #tpu.memory_space<vmem>>, vector<32x128xbf16>
    %cst = arith.constant dense<0.000000e+00> : vector<8x128xf32>
    %3 = tpu.matmul %1, %2, %cst {dimension_numbers = #tpu.dot_dimension_numbers<[1], [0], [0], [1], [0, 0, 1, 1], [], []>} : vector<8x32xbf16>, vector<32x128xbf16>, vector<8x128xf32> -> vector<8x128xf32>
    %c0_3 = arith.constant 0 : index
    %c0_4 = arith.constant 0 : index
    %4 = vector.load %arg3[%c0_3, %c0_4] : memref<8x32xf32, #tpu.memory_space<vmem>>, vector<8x32xf32>
    %5 = arith.truncf %4 : vector<8x32xf32> to vector<8x32xbf16>
    %c0_5 = arith.constant 0 : index
    %c0_6 = arith.constant 0 : index
    %6 = vector.load %arg5[%c0_5, %c0_6] : memref<32x128xbf16, #tpu.memory_space<vmem>>, vector<32x128xbf16>
    %cst_7 = arith.constant dense<0.000000e+00> : vector<8x128xf32>
    %7 = tpu.matmul %5, %6, %cst_7 {dimension_numbers = #tpu.dot_dimension_numbers<[1], [0], [0], [1], [0, 0, 1, 1], [], []>} : vector<8x32xbf16>, vector<32x128xbf16>, vector<8x128xf32> -> vector<8x128xf32>
    %8 = arith.addf %3, %7 : vector<8x128xf32>
    %c0_8 = arith.constant 0 : index
    %c0_9 = arith.constant 0 : index
    %9 = vector.load %arg6[%c0_8, %c0_9] : memref<1x128xf32, #tpu.memory_space<vmem>>, vector<1x128xf32>
    %10 = vector.broadcast %9 : vector<1x128xf32> to vector<8x128xf32>
    %11 = arith.addf %8, %10 : vector<8x128xf32>
    %12 = arith.negf %11 : vector<8x128xf32>
    %13 = math.exp %12 : vector<8x128xf32>
    %cst_10 = arith.constant 1.000000e+00 : f32
    %14 = vector.broadcast %cst_10 : f32 to vector<8x128xf32>
    %15 = arith.addf %14, %13 : vector<8x128xf32>
    %16 = arith.divf %14, %15 : vector<8x128xf32>
    %c0_11 = arith.constant 0 : index
    %c0_12 = arith.constant 0 : index
    %17 = vector.load %arg7[%c0_11, %c0_12] : memref<8x128xf32, #tpu.memory_space<vmem>>, vector<8x128xf32>
    tpu.vector_store %arg7[%c0_11, %c0_12], %16 {strides = array<i32>} : memref<8x128xf32, #tpu.memory_space<vmem>>, vector<8x128xf32>,
    return
  }
  func.func @transform_0(%arg0: i32, %arg1: i32) -> (i32, i32) {
    %c0_i32 = arith.constant 0 : i32
    %c0_i32_0 = arith.constant 0 : i32
    return %arg0, %c0_i32 : i32, i32
  }
  func.func @transform_1(%arg0: i32, %arg1: i32) -> (i32, i32) {
    %c0_i32 = arith.constant 0 : i32
    %c0_i32_0 = arith.constant 0 : i32
    return %arg0, %c0_i32 : i32, i32
  }
  func.func @transform_2(%arg0: i32, %arg1: i32) -> (i32, i32) {
    %c0_i32 = arith.constant 0 : i32
    %c0_i32_0 = arith.constant 0 : i32
    return %c0_i32, %arg1 : i32, i32
  }
  func.func @transform_3(%arg0: i32, %arg1: i32) -> (i32, i32) {
    %c0_i32 = arith.constant 0 : i32
    %c0_i32_0 = arith.constant 0 : i32
    return %c0_i32, %arg1 : i32, i32
  }
  func.func @transform_4(%arg0: i32, %arg1: i32) -> (i32, i32) {
    %c0_i32 = arith.constant 0 : i32
    %c0_i32_0 = arith.constant 0 : i32
    return %c0_i32, %arg1 : i32, i32
  }
  func.func @transform_5(%arg0: i32, %arg1: i32) -> (i32, i32) {
    %c0_i32 = arith.constant 0 : i32
    return %arg0, %arg1 : i32, i32
  }
}

module attributes {stable_mosaic.version = 11 : i64} {
  func.func @kernel(%arg0: i32, %arg1: i32, %arg2: memref<8x32xf32, #tpu.memory_space<vmem>>, %arg3: memref<8x32xf32, #tpu.memory_space<vmem>>, %arg4: memref<32x128xbf16, #tpu.memory_space<vmem>>, %arg5: memref<32x128xbf16, #tpu.memory_space<vmem>>, %arg6: memref<1x128xf32, #tpu.memory_space<vmem>>, %arg7: memref<8x128xf32, #tpu.memory_space<vmem>>) attributes {dimension_semantics = [#tpu.dimension_semantics<parallel>, #tpu.dimension_semantics<parallel>], iteration_bounds = array<i64: 1, 1>, scalar_prefetch = 0 : i64, scratch_operands = 0 : i64, tpu.core_type = #tpu.core_type<tc>, window_params = [{transform_indices = @transform_0, window_bounds = array<i64: 8, 32>}, {transform_indices = @transform_1, window_bounds = array<i64: 8, 32>}, {transform_indices = @transform_2, window_bounds = array<i64: 32, 128>}, {transform_indices = @transform_3, window_bounds = array<i64: 32, 128>}, {transform_indices = @transform_4, window_bounds = array<i64: 1, 128>}, {transform_indices = @transform_5, window_bounds = array<i64: 8, 128>}]} {
    %c0 = arith.constant 0 : index
    %c0_0 = arith.constant 0 : index
    %0 = vector.load %arg2[%c0, %c0_0] : memref<8x32xf32, #tpu.memory_space<vmem>>, vector<8x32xf32>
    %1 = arith.truncf %0 : vector<8x32xf32> to vector<8x32xbf16>
    %c0_1 = arith.constant 0 : index
    %c0_2 = arith.constant 0 : index
    %2 = vector.load %arg4[%c0_1, %c0_2] : memref<32x128xbf16, #tpu.memory_space<vmem>>, vector<32x128xbf16>
    %cst = arith.constant dense<0.000000e+00> : vector<8x128xf32>
    %3 = tpu.matmul %1, %2, %cst {dimension_numbers = #tpu.dot_dimension_numbers<[1], [0], [0], [1], [0, 0, 1, 1], [], []>} : vector<8x32xbf16>, vector<32x128xbf16>, vector<8x128xf32> -> vector<8x128xf32>
    %c0_3 = arith.constant 0 : index
    %c0_4 = arith.constant 0 : index
    %4 = vector.load %arg3[%c0_3, %c0_4] : memref<8x32xf32, #tpu.memory_space<vmem>>, vector<8x32xf32>
    %5 = arith.truncf %4 : vector<8x32xf32> to vector<8x32xbf16>
    %c0_5 = arith.constant 0 : index
    %c0_6 = arith.constant 0 : index
    %6 = vector.load %arg5[%c0_5, %c0_6] : memref<32x128xbf16, #tpu.memory_space<vmem>>, vector<32x128xbf16>
    %cst_7 = arith.constant dense<0.000000e+00> : vector<8x128xf32>
    %7 = tpu.matmul %5, %6, %cst_7 {dimension_numbers = #tpu.dot_dimension_numbers<[1], [0], [0], [1], [0, 0, 1, 1], [], []>} : vector<8x32xbf16>, vector<32x128xbf16>, vector<8x128xf32> -> vector<8x128xf32>
    %8 = arith.addf %3, %7 : vector<8x128xf32>
    %c0_8 = arith.constant 0 : index
    %c0_9 = arith.constant 0 : index
    %9 = vector.load %arg6[%c0_8, %c0_9] : memref<1x128xf32, #tpu.memory_space<vmem>>, vector<1x128xf32>
    %10 = vector.broadcast %9 : vector<1x128xf32> to vector<8x128xf32>
    %11 = arith.addf %8, %10 : vector<8x128xf32>
    %12 = arith.negf %11 : vector<8x128xf32>
    %13 = math.exp %12 : vector<8x128xf32>
    %cst_10 = arith.constant 1.000000e+00 : f32
    %14 = vector.broadcast %cst_10 : f32 to vector<8x128xf32>
    %15 = arith.addf %14, %13 : vector<8x128xf32>
    %16 = arith.divf %14, %15 : vector<8x128xf32>
    %c0_11 = arith.constant 0 : index
    %c0_12 = arith.constant 0 : index
    %17 = vector.load %arg7[%c0_11, %c0_12] : memref<8x128xf32, #tpu.memory_space<vmem>>, vector<8x128xf32>
    tpu.vector_store %arg7[%c0_11, %c0_12], %16 {strides = array<i32>} : memref<8x128xf32, #tpu.memory_space<vmem>>, vector<8x128xf32>,
    return
  }
  func.func @transform_0(%arg0: i32, %arg1: i32) -> (i32, i32) {
    %c0_i32 = arith.constant 0 : i32
    %c0_i32_0 = arith.constant 0 : i32
    return %arg0, %c0_i32 : i32, i32
  }
  func.func @transform_1(%arg0: i32, %arg1: i32) -> (i32, i32) {
    %c0_i32 = arith.constant 0 : i32
    %c0_i32_0 = arith.constant 0 : i32
    return %arg0, %c0_i32 : i32, i32
  }
  func.func @transform_2(%arg0: i32, %arg1: i32) -> (i32, i32) {
    %c0_i32 = arith.constant 0 : i32
    %c0_i32_0 = arith.constant 0 : i32
    return %c0_i32, %arg1 : i32, i32
  }
  func.func @transform_3(%arg0: i32, %arg1: i32) -> (i32, i32) {
    %c0_i32 = arith.constant 0 : i32
    %c0_i32_0 = arith.constant 0 : i32
    return %c0_i32, %arg1 : i32, i32
  }
  func.func @transform_4(%arg0: i32, %arg1: i32) -> (i32, i32) {
    %c0_i32 = arith.constant 0 : i32
    %c0_i32_0 = arith.constant 0 : i32
    return %c0_i32, %arg1 : i32, i32
  }
  func.func @transform_5(%arg0: i32, %arg1: i32) -> (i32, i32) {
    %c0_i32 = arith.constant 0 : i32
    return %arg0, %arg1 : i32, i32
  }
}

</mosaic_0001>

<llo_original>
// kernel: tpu_custom_call.1
$region0: #{tpu_custom_call.1}
  #allocation0 [shape = 'u32[]', space=smem, size = 0x4, offset = 0x4, fixed_abs, tag = 'smem constant byte address 0x4 - core index']
  #allocation1 [shape = 'u32[144,128]{1,0:T(1,128)}', space=vmem, size = 0x12000, scoped, tag = 'internal scratch']
  %s0 = inlined_call_operand.hbm [shape: f32[8,32], index: 0, kind: input, shape index: {}]
  %s1 = inlined_call_operand.hbm [shape: f32[8,32], index: 1, kind: input, shape index: {}]
  %s2 = inlined_call_operand.hbm [shape: bf16[32,128], index: 2, kind: input, shape index: {}]
  %s3 = inlined_call_operand.hbm [shape: bf16[32,128], index: 3, kind: input, shape index: {}]
  %s4 = inlined_call_operand.vmem [shape: f32[1,128], index: 4, kind: input, shape index: {}]
  %s5 = inlined_call_operand.hbm [shape: f32[8,128], index: 5, kind: output, shape index: {}]
  %s6 = sld [smem:[#allocation0]]
  $region46: #{tpu_custom_call.1} parent=0
    _
  %s8 = ssub.s32 1, %s6
  %s9 = scalar_select 0, %s8, %s6
  $region1: #{tpu_custom_call.1} parent=0
    #allocation2 [shape = 'u8[4096]{0}', space=vmem, size = 0x1000, scoped, tag = 'input window, operand 0, single buffered']
    #allocation3 [shape = 's32[1]{0}', space=sflag, size = 0x4, scoped, tag = 'scoped memory for tpu_custom_call.1']
    #allocation4 [shape = 's32[1]{0}', space=sflag, size = 0x4, scoped, tag = 'scoped memory for tpu_custom_call.1']
    #allocation5 [shape = 'u8[4096]{0}', space=vmem, size = 0x1000, scoped, tag = 'input window, operand 1, single buffered']
    #allocation6 [shape = 's32[1]{0}', space=sflag, size = 0x4, scoped, tag = 'scoped memory for tpu_custom_call.1']
    #allocation7 [shape = 'u8[8192]{0}', space=vmem, size = 0x2000, scoped, tag = 'input window, operand 2, single buffered']
    #allocation8 [shape = 'u8[8192]{0}', space=vmem, size = 0x2000, scoped, tag = 'input window, operand 3, single buffered']
    #allocation9 [shape = 's32[1]{0}', space=sflag, size = 0x4, scoped, tag = 'scoped memory for tpu_custom_call.1']
    #allocation10 [shape = 'u8[4096]{0}', space=vmem, size = 0x1000, scoped, tag = 'output window, operand 0, single buffered']
    %10 = vsyncpa [#allocation3], 0
    %11 = vsyncpa [#allocation6], 0
    %12 = vsyncpa [#allocation9], 0
    %13 = vsyncpa [#allocation4], 0
    // Predicated region
    $region2: #{tpu_custom_call.1} parent=1 // pred_check
      _
    $region3: #{tpu_custom_call.1} parent=1 // pred_check_branch
      %15 = sbr.rel (0) target = $region5
    $region4: #{tpu_custom_call.1} parent=1 // pred_region
      %s17 = ssub.s32 128, 128
      %18 = vsyncadd [#allocation3], %s17
      %s20 = sshll.u32 [#allocation2], 4
      %s21 = int_to_ptr.vmem [resolvable:$true] %s20
      %23 = dma.hbm_to_vmem [thread:$0]  %s0, 128, %s21, [#allocation3]
    $region5: #{tpu_custom_call.1} parent=1 // pred_fallthru
      _
    // Predicated region
    $region6: #{tpu_custom_call.1} parent=1 // pred_check
      _
    $region7: #{tpu_custom_call.1} parent=1 // pred_check_branch
      %25 = sbr.rel (0) target = $region9
    $region8: #{tpu_custom_call.1} parent=1 // pred_region
      %s27 = ssub.s32 128, 128
      %28 = vsyncadd [#allocation6], %s27
      %s30 = sshll.u32 [#allocation5], 4
      %s31 = int_to_ptr.vmem [resolvable:$true] %s30
      %33 = dma.hbm_to_vmem [thread:$0]  %s1, 128, %s31, [#allocation6]
    $region9: #{tpu_custom_call.1} parent=1 // pred_fallthru
      _
    // Predicated region
    $region10: #{tpu_custom_call.1} parent=1 // pred_check
      _
    $region11: #{tpu_custom_call.1} parent=1 // pred_check_branch
      %35 = sbr.rel (0) target = $region13
    $region12: #{tpu_custom_call.1} parent=1 // pred_region
      %s37 = ssub.s32 256, 256
      %38 = vsyncadd [#allocation6], %s37
      %s39 = sshll.u32 [#allocation7], 4
      %s40 = int_to_ptr.vmem [resolvable:$true] %s39
      %45 = dma.hbm_to_vmem [thread:$0]  %s2, 256, %s40, [#allocation6], 64, 64, 4
    $region13: #{tpu_custom_call.1} parent=1 // pred_fallthru
      _
    // Predicated region
    $region14: #{tpu_custom_call.1} parent=1 // pred_check
      _
    $region15: #{tpu_custom_call.1} parent=1 // pred_check_branch
      %47 = sbr.rel (0) target = $region17
    $region16: #{tpu_custom_call.1} parent=1 // pred_region
      %s49 = ssub.s32 256, 256
      %50 = vsyncadd [#allocation9], %s49
      %s51 = sshll.u32 [#allocation8], 4
      %s52 = int_to_ptr.vmem [resolvable:$true] %s51
      %57 = dma.hbm_to_vmem [thread:$0]  %s3, 256, %s52, [#allocation9], 64, 64, 4
    $region17: #{tpu_custom_call.1} parent=1 // pred_fallthru
      _
    // Predicated region
    $region18: #{tpu_custom_call.1} parent=1 // pred_check
      _
    $region19: #{tpu_custom_call.1} parent=1 // pred_check_branch
      %59 = sbr.rel (0) target = $region21
    $region20: #{tpu_custom_call.1} parent=1 // pred_region
      _
    $region21: #{tpu_custom_call.1} parent=1 // pred_fallthru
      _
    // Predicated region
    $region22: #{tpu_custom_call.1} parent=1 // pred_check
      _
    $region23: #{tpu_custom_call.1} parent=1 // pred_check_branch
      %61 = sbr.rel (0) target = $region25
    $region24: #{tpu_custom_call.1} parent=1 // pred_region
      %62 = dma.done [#allocation3], 128
    $region25: #{tpu_custom_call.1} parent=1 // pred_fallthru
      _
    // Predicated region
    $region26: #{tpu_custom_call.1} parent=1 // pred_check
      _
    $region27: #{tpu_custom_call.1} parent=1 // pred_check_branch
      %64 = sbr.rel (0) target = $region29
    $region28: #{tpu_custom_call.1} parent=1 // pred_region
      %65 = dma.done [#allocation6], 128
    $region29: #{tpu_custom_call.1} parent=1 // pred_fallthru
      _
    // Predicated region
    $region30: #{tpu_custom_call.1} parent=1 // pred_check
      _
    $region31: #{tpu_custom_call.1} parent=1 // pred_check_branch
      %67 = sbr.rel (0) target = $region33
    $region32: #{tpu_custom_call.1} parent=1 // pred_region
      %68 = dma.done [#allocation6], 256
    $region33: #{tpu_custom_call.1} parent=1 // pred_fallthru
      _
    // Predicated region
    $region34: #{tpu_custom_call.1} parent=1 // pred_check
      _
    $region35: #{tpu_custom_call.1} parent=1 // pred_check_branch
      %70 = sbr.rel (0) target = $region37
    $region36: #{tpu_custom_call.1} parent=1 // pred_region
      %71 = dma.done [#allocation9], 256
    $region37: #{tpu_custom_call.1} parent=1 // pred_fallthru
      _
    %v73 = vld [vmem:[#allocation2] sm:$0xff]
    %v74 = vpack.c.bf16 %v73, %v73
    %v75 = vld [vmem:[#allocation7] sm:$0xf]
    %v76 = vld [vmem:[#allocation7 + $0x4] sm:$0xf]
    %v77 = vld [vmem:[#allocation7 + $0x8] sm:$0xf]
    %v78 = vld [vmem:[#allocation7 + $0xc] sm:$0xf]
    %v79 = vld [vmem:[#allocation5] sm:$0xff]
    %v80 = vpack.c.bf16 %v79, %v79
    %v81 = vld [vmem:[#allocation8] sm:$0xf]
    %v82 = vld [vmem:[#allocation8 + $0x4] sm:$0xf]
    %v83 = vld [vmem:[#allocation8 + $0x8] sm:$0xf]
    %v84 = vld [vmem:[#allocation8 + $0xc] sm:$0xf]
    %v89 = vunpack.c.l.b16 %v81
    %v90 = vunpack.c.l.b16 %v82
    %v91 = vunpack.c.l.b16 %v83
    %v92 = vunpack.c.l.b16 %v84
    %v93 = vpack.c.b16 %v90, %v89
    %v94 = vpack.c.b16 %v92, %v91
    %vm97 = vcmask 261120
    %v99 = vsel %vm97, %v80, 0
    %101 = vmatprep.subr.bf16.mxu0 0
    %102 = vmatpush1.bf16.msra.mxu0 0
    %103 = vmatprep.subr.bf16.mxu0 0
    %104 = vmatpush1.bf16.msra.mxu0 0
    %105 = vmatprep.subr.bf16.mxu0 0
    %106 = vmatpush1.bf16.msra.mxu0 0
    %107 = vmatprep.subr.bf16.mxu0 0
    %108 = vmatpush1.bf16.msra.mxu0 0
    %109 = vmatprep.subr.bf16.mxu0 0
    %110 = vmatpush1.bf16.msra.mxu0 0
    %111 = vmatprep.subr.bf16.mxu0 0
    %112 = vmatpush1.bf16.msra.mxu0 0
    %113 = vmatprep.subr.bf16.mxu0 0
    %114 = vmatpush1.bf16.msra.mxu0 %v94
    %115 = vmatprep.subr.bf16.mxu0 0
    %116 = vmatpush1.bf16.msra.mxu0 %v93
    %117 = vmatprep.subr.bf16.mxu0 0
    %118 = vmatpush2.bf16.msra.mxu0 0
    %119 = vmatprep.subr.bf16.mxu0 0
    %120 = vmatpush2.bf16.msra.mxu0 0
    %121 = vmatprep.subr.bf16.mxu0 0
    %122 = vmatpush2.bf16.msra.mxu0 0
    %123 = vmatprep.subr.bf16.mxu0 0
    %124 = vmatpush2.bf16.msra.mxu0 0
    %125 = vmatprep.subr.bf16.mxu0 0
    %126 = vmatpush2.bf16.msra.mxu0 0
    %127 = vmatprep.subr.bf16.mxu0 0
    %128 = vmatpush2.bf16.msra.mxu0 0
    %129 = vmatprep.subr.bf16.mxu0 0
    %130 = vmatpush2.bf16.msra.mxu0 0
    %131 = vmatprep.subr.bf16.mxu0 0
    %132 = vmatpush2.bf16.msra.mxu0 0
    %133 = vmatprep.mubr.bf16.mxu0 0
    %134 = vmatmul.mubr.bf16.gmra.mxu0 %v99
    %v135 = vpop.f32.mrf.mxu0
    %v136 = vadd.f32 0.0, %v135
    %v137 = vpop.f32.mrf.mxu0
    %v138 = vpop.f32.mrf.mxu0
    %v139 = vpop.f32.mrf.mxu0
    %140 = vdwg.mxu0
    %v145 = vunpack.c.l.b16 %v75
    %v146 = vunpack.c.l.b16 %v76
    %v147 = vunpack.c.l.b16 %v77
    %v148 = vunpack.c.l.b16 %v78
    %v149 = vpack.c.b16 %v146, %v145
    %v150 = vpack.c.b16 %v148, %v147
    %v154 = vsel %vm97, %v74, 0
    %156 = vmatprep.subr.bf16.mxu0 0
    %157 = vmatpush1.bf16.msra.mxu0 0
    %158 = vmatprep.subr.bf16.mxu0 0
    %159 = vmatpush1.bf16.msra.mxu0 0
    %160 = vmatprep.subr.bf16.mxu0 0
    %161 = vmatpush1.bf16.msra.mxu0 0
    %162 = vmatprep.subr.bf16.mxu0 0
    %163 = vmatpush1.bf16.msra.mxu0 0
    %164 = vmatprep.subr.bf16.mxu0 0
    %165 = vmatpush1.bf16.msra.mxu0 0
    %166 = vmatprep.subr.bf16.mxu0 0
    %167 = vmatpush1.bf16.msra.mxu0 0
    %168 = vmatprep.subr.bf16.mxu0 0
    %169 = vmatpush1.bf16.msra.mxu0 %v150
    %170 = vmatprep.subr.bf16.mxu0 0
    %171 = vmatpush1.bf16.msra.mxu0 %v149
    %172 = vmatprep.subr.bf16.mxu0 0
    %173 = vmatpush2.bf16.msra.mxu0 0
    %174 = vmatprep.subr.bf16.mxu0 0
    %175 = vmatpush2.bf16.msra.mxu0 0
    %176 = vmatprep.subr.bf16.mxu0 0
    %177 = vmatpush2.bf16.msra.mxu0 0
    %178 = vmatprep.subr.bf16.mxu0 0
    %179 = vmatpush2.bf16.msra.mxu0 0
    %180 = vmatprep.subr.bf16.mxu0 0
    %181 = vmatpush2.bf16.msra.mxu0 0
    %182 = vmatprep.subr.bf16.mxu0 0
    %183 = vmatpush2.bf16.msra.mxu0 0
    %184 = vmatprep.subr.bf16.mxu0 0
    %185 = vmatpush2.bf16.msra.mxu0 0
    %186 = vmatprep.subr.bf16.mxu0 0
    %187 = vmatpush2.bf16.msra.mxu0 0
    %188 = vmatprep.mubr.bf16.mxu0 0
    %189 = vmatmul.mubr.bf16.gmra.mxu0 %v154
    %v190 = vpop.f32.mrf.mxu0
    %v191 = vadd.f32 %v136, %v190
    %v192 = vpop.f32.mrf.mxu0
    %v193 = vpop.f32.mrf.mxu0
    %v194 = vpop.f32.mrf.mxu0
    %195 = vdwg.mxu0
    %v196 = vld [vmem:[%s4] sm:$0x1]
    %v198 = vlaneseq
    %v199 = vshrl.u32 %v198, 7
    %v200 = vsub.s32 0, %v199
    %v201 = vrot.slane %v196, %v200
    %v203 = vadd.f32 %v191, %v201
    %v204 = vxor.u32 %v203, 2147483648
    %v205 = vmul.f32 %v204, 1.442695
    %v206 = vpow.pop %v205
    %v207 = vadd.f32 %v206, 1.0
    %v208 = vrcp.pop %v207
    %v209 = vmul.f32 1.0, %v208
    %210 = vst [vmem:[#allocation10] sm:$0xff] %v209
    // Predicated region
    $region38: #{tpu_custom_call.1} parent=1 // pred_check
      _
    $region39: #{tpu_custom_call.1} parent=1 // pred_check_branch
      %212 = sbr.rel (0) target = $region41
    $region40: #{tpu_custom_call.1} parent=1 // pred_region
      %s214 = ssub.s32 128, 128
      %215 = vsyncadd [#allocation4], %s214
      %s217 = sshll.u32 [#allocation10], 4
      %s218 = int_to_ptr.vmem [resolvable:$true] %s217
      %220 = dma.vmem_to_hbm [thread:$0]  %s218, 128, %s5, [#allocation4]
    $region41: #{tpu_custom_call.1} parent=1 // pred_fallthru
      _
    // Predicated region
    $region42: #{tpu_custom_call.1} parent=1 // pred_check
      _
    $region43: #{tpu_custom_call.1} parent=1 // pred_check_branch
      %222 = sbr.rel (0) target = $region45
    $region44: #{tpu_custom_call.1} parent=1 // pred_region
      %223 = dma.done [#allocation4], 128
    $region45: #{tpu_custom_call.1} parent=1 // pred_fallthru
      _
    %224 = vsyncpa [#allocation3], 1
    %225 = vsyncpa [#allocation6], 1
    %226 = vsyncpa [#allocation9], 1
    %227 = vsyncpa [#allocation4], 1

// kernel: tpu_custom_call.1
$region0: #{tpu_custom_call.1}
  #allocation0 [shape = 'u32[]', space=smem, size = 0x4, offset = 0x4, fixed_abs, tag = 'smem constant byte address 0x4 - core index']
  #allocation1 [shape = 'u32[144,128]{1,0:T(1,128)}', space=vmem, size = 0x12000, scoped, tag = 'internal scratch']
  %s0 = inlined_call_operand.hbm [shape: f32[8,32], index: 0, kind: input, shape index: {}]
  %s1 = inlined_call_operand.hbm [shape: f32[8,32], index: 1, kind: input, shape index: {}]
  %s2 = inlined_call_operand.hbm [shape: bf16[32,128], index: 2, kind: input, shape index: {}]
  %s3 = inlined_call_operand.hbm [shape: bf16[32,128], index: 3, kind: input, shape index: {}]
  %s4 = inlined_call_operand.vmem [shape: f32[1,128], index: 4, kind: input, shape index: {}]
  %s5 = inlined_call_operand.hbm [shape: f32[8,128], index: 5, kind: output, shape index: {}]
  %s6 = sld [smem:[#allocation0]]
  $region46: #{tpu_custom_call.1} parent=0
    _
  %s8 = ssub.s32 1, %s6
  %s9 = scalar_select 0, %s8, %s6
  $region1: #{tpu_custom_call.1} parent=0
    #allocation2 [shape = 'u8[4096]{0}', space=vmem, size = 0x1000, scoped, tag = 'input window, operand 0, single buffered']
    #allocation3 [shape = 's32[1]{0}', space=sflag, size = 0x4, scoped, tag = 'scoped memory for tpu_custom_call.1']
    #allocation4 [shape = 's32[1]{0}', space=sflag, size = 0x4, scoped, tag = 'scoped memory for tpu_custom_call.1']
    #allocation5 [shape = 'u8[4096]{0}', space=vmem, size = 0x1000, scoped, tag = 'input window, operand 1, single buffered']
    #allocation6 [shape = 's32[1]{0}', space=sflag, size = 0x4, scoped, tag = 'scoped memory for tpu_custom_call.1']
    #allocation7 [shape = 'u8[8192]{0}', space=vmem, size = 0x2000, scoped, tag = 'input window, operand 2, single buffered']
    #allocation8 [shape = 'u8[8192]{0}', space=vmem, size = 0x2000, scoped, tag = 'input window, operand 3, single buffered']
    #allocation9 [shape = 's32[1]{0}', space=sflag, size = 0x4, scoped, tag = 'scoped memory for tpu_custom_call.1']
    #allocation10 [shape = 'u8[4096]{0}', space=vmem, size = 0x1000, scoped, tag = 'output window, operand 0, single buffered']
    %10 = vsyncpa [#allocation3], 0
    %11 = vsyncpa [#allocation6], 0
    %12 = vsyncpa [#allocation9], 0
    %13 = vsyncpa [#allocation4], 0
    // Predicated region
    $region2: #{tpu_custom_call.1} parent=1 // pred_check
      _
    $region3: #{tpu_custom_call.1} parent=1 // pred_check_branch
      %15 = sbr.rel (0) target = $region5
    $region4: #{tpu_custom_call.1} parent=1 // pred_region
      %s17 = ssub.s32 128, 128
      %18 = vsyncadd [#allocation3], %s17
      %s20 = sshll.u32 [#allocation2], 4
      %s21 = int_to_ptr.vmem [resolvable:$true] %s20
      %23 = dma.hbm_to_vmem [thread:$0]  %s0, 128, %s21, [#allocation3]
    $region5: #{tpu_custom_call.1} parent=1 // pred_fallthru
      _
    // Predicated region
    $region6: #{tpu_custom_call.1} parent=1 // pred_check
      _
    $region7: #{tpu_custom_call.1} parent=1 // pred_check_branch
      %25 = sbr.rel (0) target = $region9
    $region8: #{tpu_custom_call.1} parent=1 // pred_region
      %s27 = ssub.s32 128, 128
      %28 = vsyncadd [#allocation6], %s27
      %s30 = sshll.u32 [#allocation5], 4
      %s31 = int_to_ptr.vmem [resolvable:$true] %s30
      %33 = dma.hbm_to_vmem [thread:$0]  %s1, 128, %s31, [#allocation6]
    $region9: #{tpu_custom_call.1} parent=1 // pred_fallthru
      _
    // Predicated region
    $region10: #{tpu_custom_call.1} parent=1 // pred_check
      _
    $region11: #{tpu_custom_call.1} parent=1 // pred_check_branch
      %35 = sbr.rel (0) target = $region13
    $region12: #{tpu_custom_call.1} parent=1 // pred_region
      %s37 = ssub.s32 256, 256
      %38 = vsyncadd [#allocation6], %s37
      %s39 = sshll.u32 [#allocation7], 4
      %s40 = int_to_ptr.vmem [resolvable:$true] %s39
      %45 = dma.hbm_to_vmem [thread:$0]  %s2, 256, %s40, [#allocation6], 64, 64, 4
    $region13: #{tpu_custom_call.1} parent=1 // pred_fallthru
      _
    // Predicated region
    $region14: #{tpu_custom_call.1} parent=1 // pred_check
      _
    $region15: #{tpu_custom_call.1} parent=1 // pred_check_branch
      %47 = sbr.rel (0) target = $region17
    $region16: #{tpu_custom_call.1} parent=1 // pred_region
      %s49 = ssub.s32 256, 256
      %50 = vsyncadd [#allocation9], %s49
      %s51 = sshll.u32 [#allocation8], 4
      %s52 = int_to_ptr.vmem [resolvable:$true] %s51
      %57 = dma.hbm_to_vmem [thread:$0]  %s3, 256, %s52, [#allocation9], 64, 64, 4
    $region17: #{tpu_custom_call.1} parent=1 // pred_fallthru
      _
    // Predicated region
    $region18: #{tpu_custom_call.1} parent=1 // pred_check
      _
    $region19: #{tpu_custom_call.1} parent=1 // pred_check_branch
      %59 = sbr.rel (0) target = $region21
    $region20: #{tpu_custom_call.1} parent=1 // pred_region
      _
    $region21: #{tpu_custom_call.1} parent=1 // pred_fallthru
      _
    // Predicated region
    $region22: #{tpu_custom_call.1} parent=1 // pred_check
      _
    $region23: #{tpu_custom_call.1} parent=1 // pred_check_branch
      %61 = sbr.rel (0) target = $region25
    $region24: #{tpu_custom_call.1} parent=1 // pred_region
      %62 = dma.done [#allocation3], 128
    $region25: #{tpu_custom_call.1} parent=1 // pred_fallthru
      _
    // Predicated region
    $region26: #{tpu_custom_call.1} parent=1 // pred_check
      _
    $region27: #{tpu_custom_call.1} parent=1 // pred_check_branch
      %64 = sbr.rel (0) target = $region29
    $region28: #{tpu_custom_call.1} parent=1 // pred_region
      %65 = dma.done [#allocation6], 128
    $region29: #{tpu_custom_call.1} parent=1 // pred_fallthru
      _
    // Predicated region
    $region30: #{tpu_custom_call.1} parent=1 // pred_check
      _
    $region31: #{tpu_custom_call.1} parent=1 // pred_check_branch
      %67 = sbr.rel (0) target = $region33
    $region32: #{tpu_custom_call.1} parent=1 // pred_region
      %68 = dma.done [#allocation6], 256
    $region33: #{tpu_custom_call.1} parent=1 // pred_fallthru
      _
    // Predicated region
    $region34: #{tpu_custom_call.1} parent=1 // pred_check
      _
    $region35: #{tpu_custom_call.1} parent=1 // pred_check_branch
      %70 = sbr.rel (0) target = $region37
    $region36: #{tpu_custom_call.1} parent=1 // pred_region
      %71 = dma.done [#allocation9], 256
    $region37: #{tpu_custom_call.1} parent=1 // pred_fallthru
      _
    %v73 = vld [vmem:[#allocation2] sm:$0xff]
    %v74 = vpack.c.bf16 %v73, %v73
    %v75 = vld [vmem:[#allocation7] sm:$0xf]
    %v76 = vld [vmem:[#allocation7 + $0x4] sm:$0xf]
    %v77 = vld [vmem:[#allocation7 + $0x8] sm:$0xf]
    %v78 = vld [vmem:[#allocation7 + $0xc] sm:$0xf]
    %v79 = vld [vmem:[#allocation5] sm:$0xff]
    %v80 = vpack.c.bf16 %v79, %v79
    %v81 = vld [vmem:[#allocation8] sm:$0xf]
    %v82 = vld [vmem:[#allocation8 + $0x4] sm:$0xf]
    %v83 = vld [vmem:[#allocation8 + $0x8] sm:$0xf]
    %v84 = vld [vmem:[#allocation8 + $0xc] sm:$0xf]
    %v89 = vunpack.c.l.b16 %v81
    %v90 = vunpack.c.l.b16 %v82
    %v91 = vunpack.c.l.b16 %v83
    %v92 = vunpack.c.l.b16 %v84
    %v93 = vpack.c.b16 %v90, %v89
    %v94 = vpack.c.b16 %v92, %v91
    %vm97 = vcmask 261120
    %v99 = vsel %vm97, %v80, 0
    %101 = vmatprep.subr.bf16.mxu0 0
    %102 = vmatpush1.bf16.msra.mxu0 0
    %103 = vmatprep.subr.bf16.mxu0 0
    %104 = vmatpush1.bf16.msra.mxu0 0
    %105 = vmatprep.subr.bf16.mxu0 0
    %106 = vmatpush1.bf16.msra.mxu0 0
    %107 = vmatprep.subr.bf16.mxu0 0
    %108 = vmatpush1.bf16.msra.mxu0 0
    %109 = vmatprep.subr.bf16.mxu0 0
    %110 = vmatpush1.bf16.msra.mxu0 0
    %111 = vmatprep.subr.bf16.mxu0 0
    %112 = vmatpush1.bf16.msra.mxu0 0
    %113 = vmatprep.subr.bf16.mxu0 0
    %114 = vmatpush1.bf16.msra.mxu0 %v94
    %115 = vmatprep.subr.bf16.mxu0 0
    %116 = vmatpush1.bf16.msra.mxu0 %v93
    %117 = vmatprep.subr.bf16.mxu0 0
    %118 = vmatpush2.bf16.msra.mxu0 0
    %119 = vmatprep.subr.bf16.mxu0 0
    %120 = vmatpush2.bf16.msra.mxu0 0
    %121 = vmatprep.subr.bf16.mxu0 0
    %122 = vmatpush2.bf16.msra.mxu0 0
    %123 = vmatprep.subr.bf16.mxu0 0
    %124 = vmatpush2.bf16.msra.mxu0 0
    %125 = vmatprep.subr.bf16.mxu0 0
    %126 = vmatpush2.bf16.msra.mxu0 0
    %127 = vmatprep.subr.bf16.mxu0 0
    %128 = vmatpush2.bf16.msra.mxu0 0
    %129 = vmatprep.subr.bf16.mxu0 0
    %130 = vmatpush2.bf16.msra.mxu0 0
    %131 = vmatprep.subr.bf16.mxu0 0
    %132 = vmatpush2.bf16.msra.mxu0 0
    %133 = vmatprep.mubr.bf16.mxu0 0
    %134 = vmatmul.mubr.bf16.gmra.mxu0 %v99
    %v135 = vpop.f32.mrf.mxu0
    %v136 = vadd.f32 0.0, %v135
    %v137 = vpop.f32.mrf.mxu0
    %v138 = vpop.f32.mrf.mxu0
    %v139 = vpop.f32.mrf.mxu0
    %140 = vdwg.mxu0
    %v145 = vunpack.c.l.b16 %v75
    %v146 = vunpack.c.l.b16 %v76
    %v147 = vunpack.c.l.b16 %v77
    %v148 = vunpack.c.l.b16 %v78
    %v149 = vpack.c.b16 %v146, %v145
    %v150 = vpack.c.b16 %v148, %v147
    %v154 = vsel %vm97, %v74, 0
    %156 = vmatprep.subr.bf16.mxu0 0
    %157 = vmatpush1.bf16.msra.mxu0 0
    %158 = vmatprep.subr.bf16.mxu0 0
    %159 = vmatpush1.bf16.msra.mxu0 0
    %160 = vmatprep.subr.bf16.mxu0 0
    %161 = vmatpush1.bf16.msra.mxu0 0
    %162 = vmatprep.subr.bf16.mxu0 0
    %163 = vmatpush1.bf16.msra.mxu0 0
    %164 = vmatprep.subr.bf16.mxu0 0
    %165 = vmatpush1.bf16.msra.mxu0 0
    %166 = vmatprep.subr.bf16.mxu0 0
    %167 = vmatpush1.bf16.msra.mxu0 0
    %168 = vmatprep.subr.bf16.mxu0 0
    %169 = vmatpush1.bf16.msra.mxu0 %v150
    %170 = vmatprep.subr.bf16.mxu0 0
    %171 = vmatpush1.bf16.msra.mxu0 %v149
    %172 = vmatprep.subr.bf16.mxu0 0
    %173 = vmatpush2.bf16.msra.mxu0 0
    %174 = vmatprep.subr.bf16.mxu0 0
    %175 = vmatpush2.bf16.msra.mxu0 0
    %176 = vmatprep.subr.bf16.mxu0 0
    %177 = vmatpush2.bf16.msra.mxu0 0
    %178 = vmatprep.subr.bf16.mxu0 0
    %179 = vmatpush2.bf16.msra.mxu0 0
    %180 = vmatprep.subr.bf16.mxu0 0
    %181 = vmatpush2.bf16.msra.mxu0 0
    %182 = vmatprep.subr.bf16.mxu0 0
    %183 = vmatpush2.bf16.msra.mxu0 0
    %184 = vmatprep.subr.bf16.mxu0 0
    %185 = vmatpush2.bf16.msra.mxu0 0
    %186 = vmatprep.subr.bf16.mxu0 0
    %187 = vmatpush2.bf16.msra.mxu0 0
    %188 = vmatprep.mubr.bf16.mxu0 0
    %189 = vmatmul.mubr.bf16.gmra.mxu0 %v154
    %v190 = vpop.f32.mrf.mxu0
    %v191 = vadd.f32 %v136, %v190
    %v192 = vpop.f32.mrf.mxu0
    %v193 = vpop.f32.mrf.mxu0
    %v194 = vpop.f32.mrf.mxu0
    %195 = vdwg.mxu0
    %v196 = vld [vmem:[%s4] sm:$0x1]
    %v198 = vlaneseq
    %v199 = vshrl.u32 %v198, 7
    %v200 = vsub.s32 0, %v199
    %v201 = vrot.slane %v196, %v200
    %v203 = vadd.f32 %v191, %v201
    %v204 = vxor.u32 %v203, 2147483648
    %v205 = vmul.f32 %v204, 1.442695
    %v206 = vpow.pop %v205
    %v207 = vadd.f32 %v206, 1.0
    %v208 = vrcp.pop %v207
    %v209 = vmul.f32 1.0, %v208
    %210 = vst [vmem:[#allocation10] sm:$0xff] %v209
    // Predicated region
    $region38: #{tpu_custom_call.1} parent=1 // pred_check
      _
    $region39: #{tpu_custom_call.1} parent=1 // pred_check_branch
      %212 = sbr.rel (0) target = $region41
    $region40: #{tpu_custom_call.1} parent=1 // pred_region
      %s214 = ssub.s32 128, 128
      %215 = vsyncadd [#allocation4], %s214
      %s217 = sshll.u32 [#allocation10], 4
      %s218 = int_to_ptr.vmem [resolvable:$true] %s217
      %220 = dma.vmem_to_hbm [thread:$0]  %s218, 128, %s5, [#allocation4]
    $region41: #{tpu_custom_call.1} parent=1 // pred_fallthru
      _
    // Predicated region
    $region42: #{tpu_custom_call.1} parent=1 // pred_check
      _
    $region43: #{tpu_custom_call.1} parent=1 // pred_check_branch
      %222 = sbr.rel (0) target = $region45
    $region44: #{tpu_custom_call.1} parent=1 // pred_region
      %223 = dma.done [#allocation4], 128
    $region45: #{tpu_custom_call.1} parent=1 // pred_fallthru
      _
    %224 = vsyncpa [#allocation3], 1
    %225 = vsyncpa [#allocation6], 1
    %226 = vsyncpa [#allocation9], 1
    %227 = vsyncpa [#allocation4], 1

</llo_original>
